<compile_context>
chip_gen: v6e
topology: v6e:2x2x1
jax: 0.10.0
libtpu: 0.0.40
codegen_flags: <defaults>
</compile_context>

<pallas_src>
import functools

import jax
import jax.numpy as jnp
from jax import lax
from jax.experimental import pallas as pl
from jax.experimental.pallas import tpu as pltpu


def _round_up(x, m):
    return (x + m - 1) // m * m


def _md_dsconv_kernel(x_ref, w1_ref, b1_ref, w2_ref, b2_ref,
                      wpw_ref, bpw_ref, out_ref, xpad_ref,
                      *, H, W, C, K, dilation):
    """One image per grid step; W and C folded into the lane dim.

    x_ref    : (1, H, W*C)       input image (channels innermost in lanes)
    w1_ref   : (K*K, 1, W*C)     dw taps (dil=1), BN scale + W-boundary mask folded
    b1_ref   : (1, W*C)          folded BN bias (dil=1), tiled over W
    w2_ref   : (K*K, 1, W*C)     dw taps (dil=d), BN scale + W-boundary mask folded
    b2_ref   : (1, W*C)          folded BN bias (dil=d), tiled over W
    wpw_ref  : (W*C, W*Cout_p)   block-diagonal 1x1 weight, BN scale folded
    bpw_ref  : (1, W*Cout_p)     folded BN bias, tiled over W
    out_ref  : (1, H, W*Cout_p)
    xpad_ref : (H + 2*p2, W*C)   VMEM scratch with zero halo rows
    """
    WC = W * C
    p1 = (K - 1) // 2
    p2 = p1 * dilation
    f32 = jnp.float32

    # Build the H halo on-chip: zero top/bottom bands, copy the image between.
    # (Unconditional: each grid step is a different image, and under megacore
    # sharding each core has its own scratch instance.)
    xpad_ref[pl.ds(0, p2), :] = jnp.zeros((p2, WC), f32)
    xpad_ref[pl.ds(p2 + H, p2), :] = jnp.zeros((p2, WC), f32)
    xpad_ref[pl.ds(p2, H), :] = x_ref[0].astype(f32)

    acc1 = jnp.zeros((H, WC), f32)
    acc2 = jnp.zeros((H, WC), f32)

    for kh in range(K):
        # Vertical taps = row-offset loads from the padded scratch.
        rows1 = xpad_ref[pl.ds(p2 + (kh - p1), H), :]              # dilation = 1
        if kh == p1:
            rows2 = rows1                                          # shared center row
        else:
            rows2 = xpad_ref[pl.ds(p2 + (kh - p1) * dilation, H), :]  # dilation = d
        for kw in range(K):
            t = kh * K + kw
            dw1 = (kw - p1)               # horizontal offset, dilation 1
            dw2 = (kw - p1) * dilation    # horizontal offset, dilation d
            # Horizontal taps = XLU lane rolls; wrapped-around lanes are zeroed
            # by the boundary mask folded into w1/w2 in the wrapper.
            s1 = rows1 if dw1 == 0 else pltpu.roll(rows1, (-dw1 * C) % WC, axis=1)
            s2 = rows2 if dw2 == 0 else pltpu.roll(rows2, (-dw2 * C) % WC, axis=1)
            acc1 = acc1 + s1 * w1_ref[t]
            acc2 = acc2 + s2 * w2_ref[t]

    # Folded-BN bias + ReLU per path, then the module's in-place sum.
    xs = (jnp.maximum(acc1 + b1_ref[...], 0.0) +
          jnp.maximum(acc2 + b2_ref[...], 0.0))                    # (H, W*C)

    # Pointwise 1x1 conv as one block-diagonal matmul: contraction dim W*C
    # (>=128 -> MXU-native K), no pre-matmul reshape of the activation tile.
    y = jnp.dot(xs, wpw_ref[...], preferred_element_type=jnp.float32)
    out_ref[0] = jnp.maximum(y + bpw_ref[...], 0.0)                # lane-dense store


def _fold_dw_weights(w_flat, scale, *, W, C, K, dilation):
    """(K*K, C) taps * per-channel BN scale -> (K*K, 1, W*C) lane vectors with
    out-of-image horizontal positions zeroed (so in-kernel lane rolls can wrap
    around without corrupting the result)."""
    w = (w_flat * scale.reshape(1, C)).reshape(K, K, 1, C)
    w = jnp.broadcast_to(w, (K, K, W, C))
    cols = jnp.arange(W)[None, :]                                   # (1, W)
    kw_off = (jnp.arange(K) - (K - 1) // 2)[:, None] * dilation     # (K, 1)
    valid = ((cols + kw_off) >= 0) & ((cols + kw_off) < W)          # (K_w, W)
    w = w * valid[None, :, :, None].astype(w.dtype)
    return w.reshape(K * K, 1, W * C)


def multi_dilation_dsconv(x_nhwc, params, *, kernel_size=3, dilation=2,
                          io_dtype=jnp.float32):
    """x_nhwc: (B, H, W, C) float32; stride=1, dilation>1 (dilated branch)."""
    B, H, W, C = x_nhwc.shape
    K = kernel_size
    assert dilation > 1, "this kernel implements the dilated branch (stride=1)"
    wdw, s1, b1, wddw, s2, b2, wpw, spw, bpw = params
    Cout = wpw.shape[1]
    WC = W * C

    # ---- fold eval-mode BN scales (and W-boundary masks) into the weights ----
    w1 = _fold_dw_weights(wdw, s1.reshape(-1), W=W, C=C, K=K, dilation=1)
    w2 = _fold_dw_weights(wddw, s2.reshape(-1), W=W, C=C, K=K, dilation=dilation)
    b1v = jnp.tile(b1.reshape(1, C), (1, W))            # (1, W*C)
    b2v = jnp.tile(b2.reshape(1, C), (1, W))

    # ---- pointwise: fold BN scale, (optionally) pad Cout for lane density,
    #      expand to a block-diagonal (W*C, W*Cout_p) matrix ----
    wpw_f = wpw * spw.reshape(1, Cout)
    Cout_p = Cout if (W * Cout) % 128 == 0 else _round_up(Cout, 128)
    if Cout_p != Cout:
        wpw_f = jnp.pad(wpw_f, ((0, 0), (0, Cout_p - Cout)))
        bpw_f = jnp.pad(bpw.reshape(-1), (0, Cout_p - Cout))
    else:
        bpw_f = bpw.reshape(-1)
    big_w = jnp.kron(jnp.eye(W, dtype=wpw_f.dtype), wpw_f)   # (W*C, W*Cout_p)
    bpwv = jnp.tile(bpw_f.reshape(1, Cout_p), (1, W))        # (1, W*Cout_p)
    WCo = W * Cout_p

    # ---- input: channels fold into lanes; pure view, no pad, no tile stack ----
    x2d = x_nhwc.reshape(B, H, WC).astype(io_dtype)

    p2 = ((K - 1) // 2) * dilation
    Hp = H + 2 * p2

    kernel = functools.partial(_md_dsconv_kernel, H=H, W=W, C=C, K=K,
                               dilation=dilation)

    # ---- VMEM budget: double-buffered tiles + constants + scratch, with
    #      headroom, capped well below v7x's 64 MiB physical VMEM ----
    isz = 4
    tile_bytes = (H * WC + H * WCo) * isz
    const_bytes = (2 * K * K * WC + 2 * WC + WC * WCo + WCo) * isz
    scratch_bytes = Hp * WC * isz
    need = 2 * tile_bytes + 2 * const_bytes + scratch_bytes
    vmem_limit = int(min(max(2 * need, 16 * 1024 * 1024), 48 * 1024 * 1024))

    out = pl.pallas_call(
        kernel,
        out_shape=jax.ShapeDtypeStruct((B, H, WCo), jnp.float32),
        grid_spec=pltpu.PrefetchScalarGridSpec(
            num_scalar_prefetch=0,
            grid=(B,),
            in_specs=[
                pl.BlockSpec((1, H, WC), lambda b: (b, 0, 0)),
                pl.BlockSpec((K * K, 1, WC), lambda b: (0, 0, 0)),
                pl.BlockSpec((1, WC), lambda b: (0, 0)),
                pl.BlockSpec((K * K, 1, WC), lambda b: (0, 0, 0)),
                pl.BlockSpec((1, WC), lambda b: (0, 0)),
                pl.BlockSpec((WC, WCo), lambda b: (0, 0)),
                pl.BlockSpec((1, WCo), lambda b: (0, 0)),
            ],
            out_specs=pl.BlockSpec((1, H, WCo), lambda b: (b, 0, 0)),
            scratch_shapes=[pltpu.VMEM((Hp, WC), jnp.float32)],
        ),
        compiler_params=pltpu.CompilerParams(
            dimension_semantics=("parallel",),
            vmem_limit_bytes=vmem_limit,
        ),
    )(x2d, w1, b1v, w2, b2v, big_w, bpwv)

    out = out.reshape(B, H, W, Cout_p)
    return out[..., :Cout] if Cout_p != Cout else out


# ------------------------- parameter setup (synthetic) -------------------------

def fold_bn(gamma, beta, mean, var, eps=1e-5):
    scale = gamma / jnp.sqrt(var + eps)
    bias = beta - mean * scale
    return scale, bias


def make_params(key, cin, cout, kernel_size=3):
    K = kernel_size
    ks = jax.random.split(key, 16)
    # depthwise conv weights (torch shape (Cin,1,K,K)) -> (K*K, Cin)
    wdw = 0.1 * jax.random.normal(ks[0], (K * K, cin), jnp.float32)
    wddw = 0.1 * jax.random.normal(ks[1], (K * K, cin), jnp.float32)
    # pointwise conv weight (torch (Cout,Cin,1,1)) -> (Cin, Cout)
    wpw = 0.1 * jax.random.normal(ks[2], (cin, cout), jnp.float32)

    def bn(kg, kb, km, kv, n):
        g = 1.0 + 0.1 * jax.random.normal(kg, (n,), jnp.float32)
        b = 0.1 * jax.random.normal(kb, (n,), jnp.float32)
        m = 0.1 * jax.random.normal(km, (n,), jnp.float32)
        v = 0.5 + jax.random.uniform(kv, (n,), jnp.float32)
        return fold_bn(g, b, m, v)

    s1, bb1 = bn(ks[3], ks[4], ks[5], ks[6], cin)
    s2, bb2 = bn(ks[7], ks[8], ks[9], ks[10], cin)
    s3, bb3 = bn(ks[11], ks[12], ks[13], ks[14], cout)
    # store scale/bias as (1, C) rows
    return (wdw, s1[None, :], bb1[None, :],
            wddw, s2[None, :], bb2[None, :],
            wpw, s3[None, :], bb3[None, :])


# ------------------------- pure-JAX reference -------------------------

def ref_forward(x_nhwc, params, kernel_size=3, dilation=2):
    wdw, s1, b1, wddw, s2, b2, wpw, spw, bpw = params
    K = kernel_size
    C = x_nhwc.shape[-1]

    def dwconv(x, w_flat, d):
        pad = ((K - 1) // 2) * d
        w = w_flat.reshape(K, K, 1, C)
        return lax.conv_general_dilated(
            x, w, window_strides=(1, 1), padding=[(pad, pad), (pad, pad)],
            rhs_dilation=(d, d), dimension_numbers=('NHWC', 'HWIO', 'NHWC'),
            feature_group_count=C)

    x_dw = jax.nn.relu(dwconv(x_nhwc, wdw, 1) * s1 + b1)
    x_ddw = jax.nn.relu(dwconv(x_nhwc, wddw, dilation) * s2 + b2)
    xs = x_dw + x_ddw
    y = jnp.einsum('bhwc,co->bhwo', xs, wpw)
    return jax.nn.relu(y * spw + bpw)


if __name__ == "__main__":
    key = jax.random.PRNGKey(0)
    kx, kp = jax.random.split(key)

    B, Cin, Cout, H, W = 2, 8, 16, 16, 16
    dilation = 2

    # PyTorch module consumes NCHW; generate NCHW then transpose to NHWC.
    x_nchw = jax.random.normal(kx, (B, Cin, H, W), jnp.float32)
    x_nhwc = jnp.transpose(x_nchw, (0, 2, 3, 1))

    params = make_params(kp, Cin, Cout)

    out = multi_dilation_dsconv(x_nhwc, params, kernel_size=3, dilation=dilation)
    out = jax.block_until_ready(out)

    ref = ref_forward(x_nhwc, params, kernel_size=3, dilation=dilation)
    assert out.shape == (B, H, W, Cout)
    assert jnp.allclose(out, ref, atol=1e-4, rtol=1e-4), "mismatch vs JAX reference"

    print("KERNEL_OK")
</pallas_src>

<mosaic_0001>
module attributes {stable_mosaic.version = 11 : i64} {
  func.func @_md_dsconv_kernel(%arg0: i32, %arg1: memref<1x16x128xf32, #tpu.memory_space<vmem>>, %arg2: memref<9x1x128xf32, #tpu.memory_space<vmem>>, %arg3: memref<1x128xf32, #tpu.memory_space<vmem>>, %arg4: memref<9x1x128xf32, #tpu.memory_space<vmem>>, %arg5: memref<1x128xf32, #tpu.memory_space<vmem>>, %arg6: memref<128x256xf32, #tpu.memory_space<vmem>>, %arg7: memref<1x256xf32, #tpu.memory_space<vmem>>, %arg8: memref<1x16x256xf32, #tpu.memory_space<vmem>>, %arg9: memref<20x128xf32, #tpu.memory_space<vmem>>) attributes {dimension_semantics = [#tpu.dimension_semantics<parallel>], iteration_bounds = array<i64: 2>, scalar_prefetch = 0 : i64, scratch_operands = 1 : i64, tpu.core_type = #tpu.core_type<tc>, window_params = [{transform_indices = @transform_0, window_bounds = array<i64: 1, 16, 128>}, {pipeline_mode = #tpu.pipeline_mode<synchronous>, transform_indices = @transform_1, window_bounds = array<i64: 9, 1, 128>}, {pipeline_mode = #tpu.pipeline_mode<synchronous>, transform_indices = @transform_2, window_bounds = array<i64: 1, 128>}, {pipeline_mode = #tpu.pipeline_mode<synchronous>, transform_indices = @transform_3, window_bounds = array<i64: 9, 1, 128>}, {pipeline_mode = #tpu.pipeline_mode<synchronous>, transform_indices = @transform_4, window_bounds = array<i64: 1, 128>}, {pipeline_mode = #tpu.pipeline_mode<synchronous>, transform_indices = @transform_5, window_bounds = array<i64: 128, 256>}, {pipeline_mode = #tpu.pipeline_mode<synchronous>, transform_indices = @transform_6, window_bounds = array<i64: 1, 256>}, {transform_indices = @transform_7, window_bounds = array<i64: 1, 16, 256>}]} {
    %cst = arith.constant 0.000000e+00 : f32
    %0 = vector.broadcast %cst : f32 to vector<2x128xf32>
    %c0 = arith.constant 0 : index
    %c0_0 = arith.constant 0 : index
    %1 = vector.load %arg9[%c0, %c0_0] : memref<20x128xf32, #tpu.memory_space<vmem>>, vector<2x128xf32>
    tpu.vector_store %arg9[%c0, %c0_0], %0 {strides = array<i32>} : memref<20x128xf32, #tpu.memory_space<vmem>>, vector<2x128xf32>,
    %cst_1 = arith.constant 0.000000e+00 : f32
    %2 = vector.broadcast %cst_1 : f32 to vector<2x128xf32>
    %c18 = arith.constant 18 : index
    %c0_2 = arith.constant 0 : index
    %3 = vector.load %arg9[%c18, %c0_2] : memref<20x128xf32, #tpu.memory_space<vmem>>, vector<2x128xf32>
    tpu.vector_store %arg9[%c18, %c0_2], %2 {strides = array<i32>} : memref<20x128xf32, #tpu.memory_space<vmem>>, vector<2x128xf32>,
    %c0_3 = arith.constant 0 : index
    %c0_4 = arith.constant 0 : index
    %c0_5 = arith.constant 0 : index
    %4 = vector.load %arg1[%c0_3, %c0_4, %c0_5] : memref<1x16x128xf32, #tpu.memory_space<vmem>>, vector<1x16x128xf32>
    %5 = vector.shape_cast %4 : vector<1x16x128xf32> to vector<16x128xf32>
    %c2 = arith.constant 2 : index
    %c0_6 = arith.constant 0 : index
    %6 = vector.load %arg9[%c2, %c0_6] : memref<20x128xf32, #tpu.memory_space<vmem>>, vector<16x128xf32>
    tpu.vector_store %arg9[%c2, %c0_6], %5 {strides = array<i32>} : memref<20x128xf32, #tpu.memory_space<vmem>>, vector<16x128xf32>,
    %cst_7 = arith.constant 0.000000e+00 : f32
    %7 = vector.broadcast %cst_7 : f32 to vector<16x128xf32>
    %cst_8 = arith.constant 0.000000e+00 : f32
    %8 = vector.broadcast %cst_8 : f32 to vector<16x128xf32>
    %c1 = arith.constant 1 : index
    %c0_9 = arith.constant 0 : index
    %9 = vector.load %arg9[%c1, %c0_9] : memref<20x128xf32, #tpu.memory_space<vmem>>, vector<16x128xf32>
    %c0_10 = arith.constant 0 : index
    %c0_11 = arith.constant 0 : index
    %10 = vector.load %arg9[%c0_10, %c0_11] : memref<20x128xf32, #tpu.memory_space<vmem>>, vector<16x128xf32>
    %c8_i32 = arith.constant 8 : i32
    %11 = tpu.dynamic_rotate %9 by %c8_i32 dim 1 : vector<16x128xf32>, i32 -> vector<16x128xf32>
    %c16_i32 = arith.constant 16 : i32
    %12 = tpu.dynamic_rotate %10 by %c16_i32 dim 1 : vector<16x128xf32>, i32 -> vector<16x128xf32>
    %c0_12 = arith.constant 0 : index
    %c0_13 = arith.constant 0 : index
    %c0_14 = arith.constant 0 : index
    %13 = vector.load %arg2[%c0_12, %c0_13, %c0_14] : memref<9x1x128xf32, #tpu.memory_space<vmem>>, vector<1x1x128xf32>
    %14 = vector.shape_cast %13 : vector<1x1x128xf32> to vector<1x128xf32>
    %15 = vector.broadcast %14 : vector<1x128xf32> to vector<16x128xf32>
    %16 = arith.mulf %11, %15 : vector<16x128xf32>
    %17 = arith.addf %7, %16 : vector<16x128xf32>
    %c0_15 = arith.constant 0 : index
    %c0_16 = arith.constant 0 : index
    %c0_17 = arith.constant 0 : index
    %18 = vector.load %arg4[%c0_15, %c0_16, %c0_17] : memref<9x1x128xf32, #tpu.memory_space<vmem>>, vector<1x1x128xf32>
    %19 = vector.shape_cast %18 : vector<1x1x128xf32> to vector<1x128xf32>
    %20 = vector.broadcast %19 : vector<1x128xf32> to vector<16x128xf32>
    %21 = arith.mulf %12, %20 : vector<16x128xf32>
    %22 = arith.addf %8, %21 : vector<16x128xf32>
    %c1_18 = arith.constant 1 : index
    %c0_19 = arith.constant 0 : index
    %c0_20 = arith.constant 0 : index
    %23 = vector.load %arg2[%c1_18, %c0_19, %c0_20] : memref<9x1x128xf32, #tpu.memory_space<vmem>>, vector<1x1x128xf32>
    %24 = vector.shape_cast %23 : vector<1x1x128xf32> to vector<1x128xf32>
    %25 = vector.broadcast %24 : vector<1x128xf32> to vector<16x128xf32>
    %26 = arith.mulf %9, %25 : vector<16x128xf32>
    %27 = arith.addf %17, %26 : vector<16x128xf32>
    %c1_21 = arith.constant 1 : index
    %c0_22 = arith.constant 0 : index
    %c0_23 = arith.constant 0 : index
    %28 = vector.load %arg4[%c1_21, %c0_22, %c0_23] : memref<9x1x128xf32, #tpu.memory_space<vmem>>, vector<1x1x128xf32>
    %29 = vector.shape_cast %28 : vector<1x1x128xf32> to vector<1x128xf32>
    %30 = vector.broadcast %29 : vector<1x128xf32> to vector<16x128xf32>
    %31 = arith.mulf %10, %30 : vector<16x128xf32>
    %32 = arith.addf %22, %31 : vector<16x128xf32>
    %c120_i32 = arith.constant 120 : i32
    %33 = tpu.dynamic_rotate %9 by %c120_i32 dim 1 : vector<16x128xf32>, i32 -> vector<16x128xf32>
    %c112_i32 = arith.constant 112 : i32
    %34 = tpu.dynamic_rotate %10 by %c112_i32 dim 1 : vector<16x128xf32>, i32 -> vector<16x128xf32>
    %c2_24 = arith.constant 2 : index
    %c0_25 = arith.constant 0 : index
    %c0_26 = arith.constant 0 : index
    %35 = vector.load %arg2[%c2_24, %c0_25, %c0_26] : memref<9x1x128xf32, #tpu.memory_space<vmem>>, vector<1x1x128xf32>
    %36 = vector.shape_cast %35 : vector<1x1x128xf32> to vector<1x128xf32>
    %37 = vector.broadcast %36 : vector<1x128xf32> to vector<16x128xf32>
    %38 = arith.mulf %33, %37 : vector<16x128xf32>
    %39 = arith.addf %27, %38 : vector<16x128xf32>
    %c2_27 = arith.constant 2 : index
    %c0_28 = arith.constant 0 : index
    %c0_29 = arith.constant 0 : index
    %40 = vector.load %arg4[%c2_27, %c0_28, %c0_29] : memref<9x1x128xf32, #tpu.memory_space<vmem>>, vector<1x1x128xf32>
    %41 = vector.shape_cast %40 : vector<1x1x128xf32> to vector<1x128xf32>
    %42 = vector.broadcast %41 : vector<1x128xf32> to vector<16x128xf32>
    %43 = arith.mulf %34, %42 : vector<16x128xf32>
    %44 = arith.addf %32, %43 : vector<16x128xf32>
    %c2_30 = arith.constant 2 : index
    %c0_31 = arith.constant 0 : index
    %45 = vector.load %arg9[%c2_30, %c0_31] : memref<20x128xf32, #tpu.memory_space<vmem>>, vector<16x128xf32>
    %c8_i32_32 = arith.constant 8 : i32
    %46 = tpu.dynamic_rotate %45 by %c8_i32_32 dim 1 : vector<16x128xf32>, i32 -> vector<16x128xf32>
    %c16_i32_33 = arith.constant 16 : i32
    %47 = tpu.dynamic_rotate %45 by %c16_i32_33 dim 1 : vector<16x128xf32>, i32 -> vector<16x128xf32>
    %c3 = arith.constant 3 : index
    %c0_34 = arith.constant 0 : index
    %c0_35 = arith.constant 0 : index
    %48 = vector.load %arg2[%c3, %c0_34, %c0_35] : memref<9x1x128xf32, #tpu.memory_space<vmem>>, vector<1x1x128xf32>
    %49 = vector.shape_cast %48 : vector<1x1x128xf32> to vector<1x128xf32>
    %50 = vector.broadcast %49 : vector<1x128xf32> to vector<16x128xf32>
    %51 = arith.mulf %46, %50 : vector<16x128xf32>
    %52 = arith.addf %39, %51 : vector<16x128xf32>
    %c3_36 = arith.constant 3 : index
    %c0_37 = arith.constant 0 : index
    %c0_38 = arith.constant 0 : index
    %53 = vector.load %arg4[%c3_36, %c0_37, %c0_38] : memref<9x1x128xf32, #tpu.memory_space<vmem>>, vector<1x1x128xf32>
    %54 = vector.shape_cast %53 : vector<1x1x128xf32> to vector<1x128xf32>
    %55 = vector.broadcast %54 : vector<1x128xf32> to vector<16x128xf32>
    %56 = arith.mulf %47, %55 : vector<16x128xf32>
    %57 = arith.addf %44, %56 : vector<16x128xf32>
    %c4 = arith.constant 4 : index
    %c0_39 = arith.constant 0 : index
    %c0_40 = arith.constant 0 : index
    %58 = vector.load %arg2[%c4, %c0_39, %c0_40] : memref<9x1x128xf32, #tpu.memory_space<vmem>>, vector<1x1x128xf32>
    %59 = vector.shape_cast %58 : vector<1x1x128xf32> to vector<1x128xf32>
    %60 = vector.broadcast %59 : vector<1x128xf32> to vector<16x128xf32>
    %61 = arith.mulf %45, %60 : vector<16x128xf32>
    %62 = arith.addf %52, %61 : vector<16x128xf32>
    %c4_41 = arith.constant 4 : index
    %c0_42 = arith.constant 0 : index
    %c0_43 = arith.constant 0 : index
    %63 = vector.load %arg4[%c4_41, %c0_42, %c0_43] : memref<9x1x128xf32, #tpu.memory_space<vmem>>, vector<1x1x128xf32>
    %64 = vector.shape_cast %63 : vector<1x1x128xf32> to vector<1x128xf32>
    %65 = vector.broadcast %64 : vector<1x128xf32> to vector<16x128xf32>
    %66 = arith.mulf %45, %65 : vector<16x128xf32>
    %67 = arith.addf %57, %66 : vector<16x128xf32>
    %c120_i32_44 = arith.constant 120 : i32
    %68 = tpu.dynamic_rotate %45 by %c120_i32_44 dim 1 : vector<16x128xf32>, i32 -> vector<16x128xf32>
    %c112_i32_45 = arith.constant 112 : i32
    %69 = tpu.dynamic_rotate %45 by %c112_i32_45 dim 1 : vector<16x128xf32>, i32 -> vector<16x128xf32>
    %c5 = arith.constant 5 : index
    %c0_46 = arith.constant 0 : index
    %c0_47 = arith.constant 0 : index
    %70 = vector.load %arg2[%c5, %c0_46, %c0_47] : memref<9x1x128xf32, #tpu.memory_space<vmem>>, vector<1x1x128xf32>
    %71 = vector.shape_cast %70 : vector<1x1x128xf32> to vector<1x128xf32>
    %72 = vector.broadcast %71 : vector<1x128xf32> to vector<16x128xf32>
    %73 = arith.mulf %68, %72 : vector<16x128xf32>
    %74 = arith.addf %62, %73 : vector<16x128xf32>
    %c5_48 = arith.constant 5 : index
    %c0_49 = arith.constant 0 : index
    %c0_50 = arith.constant 0 : index
    %75 = vector.load %arg4[%c5_48, %c0_49, %c0_50] : memref<9x1x128xf32, #tpu.memory_space<vmem>>, vector<1x1x128xf32>
    %76 = vector.shape_cast %75 : vector<1x1x128xf32> to vector<1x128xf32>
    %77 = vector.broadcast %76 : vector<1x128xf32> to vector<16x128xf32>
    %78 = arith.mulf %69, %77 : vector<16x128xf32>
    %79 = arith.addf %67, %78 : vector<16x128xf32>
    %c3_51 = arith.constant 3 : index
    %c0_52 = arith.constant 0 : index
    %80 = vector.load %arg9[%c3_51, %c0_52] : memref<20x128xf32, #tpu.memory_space<vmem>>, vector<16x128xf32>
    %c4_53 = arith.constant 4 : index
    %c0_54 = arith.constant 0 : index
    %81 = vector.load %arg9[%c4_53, %c0_54] : memref<20x128xf32, #tpu.memory_space<vmem>>, vector<16x128xf32>
    %c8_i32_55 = arith.constant 8 : i32
    %82 = tpu.dynamic_rotate %80 by %c8_i32_55 dim 1 : vector<16x128xf32>, i32 -> vector<16x128xf32>
    %c16_i32_56 = arith.constant 16 : i32
    %83 = tpu.dynamic_rotate %81 by %c16_i32_56 dim 1 : vector<16x128xf32>, i32 -> vector<16x128xf32>
    %c6 = arith.constant 6 : index
    %c0_57 = arith.constant 0 : index
    %c0_58 = arith.constant 0 : index
    %84 = vector.load %arg2[%c6, %c0_57, %c0_58] : memref<9x1x128xf32, #tpu.memory_space<vmem>>, vector<1x1x128xf32>
    %85 = vector.shape_cast %84 : vector<1x1x128xf32> to vector<1x128xf32>
    %86 = vector.broadcast %85 : vector<1x128xf32> to vector<16x128xf32>
    %87 = arith.mulf %82, %86 : vector<16x128xf32>
    %88 = arith.addf %74, %87 : vector<16x128xf32>
    %c6_59 = arith.constant 6 : index
    %c0_60 = arith.constant 0 : index
    %c0_61 = arith.constant 0 : index
    %89 = vector.load %arg4[%c6_59, %c0_60, %c0_61] : memref<9x1x128xf32, #tpu.memory_space<vmem>>, vector<1x1x128xf32>
    %90 = vector.shape_cast %89 : vector<1x1x128xf32> to vector<1x128xf32>
    %91 = vector.broadcast %90 : vector<1x128xf32> to vector<16x128xf32>
    %92 = arith.mulf %83, %91 : vector<16x128xf32>
    %93 = arith.addf %79, %92 : vector<16x128xf32>
    %c7 = arith.constant 7 : index
    %c0_62 = arith.constant 0 : index
    %c0_63 = arith.constant 0 : index
    %94 = vector.load %arg2[%c7, %c0_62, %c0_63] : memref<9x1x128xf32, #tpu.memory_space<vmem>>, vector<1x1x128xf32>
    %95 = vector.shape_cast %94 : vector<1x1x128xf32> to vector<1x128xf32>
    %96 = vector.broadcast %95 : vector<1x128xf32> to vector<16x128xf32>
    %97 = arith.mulf %80, %96 : vector<16x128xf32>
    %98 = arith.addf %88, %97 : vector<16x128xf32>
    %c7_64 = arith.constant 7 : index
    %c0_65 = arith.constant 0 : index
    %c0_66 = arith.constant 0 : index
    %99 = vector.load %arg4[%c7_64, %c0_65, %c0_66] : memref<9x1x128xf32, #tpu.memory_space<vmem>>, vector<1x1x128xf32>
    %100 = vector.shape_cast %99 : vector<1x1x128xf32> to vector<1x128xf32>
    %101 = vector.broadcast %100 : vector<1x128xf32> to vector<16x128xf32>
    %102 = arith.mulf %81, %101 : vector<16x128xf32>
    %103 = arith.addf %93, %102 : vector<16x128xf32>
    %c120_i32_67 = arith.constant 120 : i32
    %104 = tpu.dynamic_rotate %80 by %c120_i32_67 dim 1 : vector<16x128xf32>, i32 -> vector<16x128xf32>
    %c112_i32_68 = arith.constant 112 : i32
    %105 = tpu.dynamic_rotate %81 by %c112_i32_68 dim 1 : vector<16x128xf32>, i32 -> vector<16x128xf32>
    %c8 = arith.constant 8 : index
    %c0_69 = arith.constant 0 : index
    %c0_70 = arith.constant 0 : index
    %106 = vector.load %arg2[%c8, %c0_69, %c0_70] : memref<9x1x128xf32, #tpu.memory_space<vmem>>, vector<1x1x128xf32>
    %107 = vector.shape_cast %106 : vector<1x1x128xf32> to vector<1x128xf32>
    %108 = vector.broadcast %107 : vector<1x128xf32> to vector<16x128xf32>
    %109 = arith.mulf %104, %108 : vector<16x128xf32>
    %110 = arith.addf %98, %109 : vector<16x128xf32>
    %c8_71 = arith.constant 8 : index
    %c0_72 = arith.constant 0 : index
    %c0_73 = arith.constant 0 : index
    %111 = vector.load %arg4[%c8_71, %c0_72, %c0_73] : memref<9x1x128xf32, #tpu.memory_space<vmem>>, vector<1x1x128xf32>
    %112 = vector.shape_cast %111 : vector<1x1x128xf32> to vector<1x128xf32>
    %113 = vector.broadcast %112 : vector<1x128xf32> to vector<16x128xf32>
    %114 = arith.mulf %105, %113 : vector<16x128xf32>
    %115 = arith.addf %103, %114 : vector<16x128xf32>
    %c0_74 = arith.constant 0 : index
    %c0_75 = arith.constant 0 : index
    %116 = vector.load %arg3[%c0_74, %c0_75] : memref<1x128xf32, #tpu.memory_space<vmem>>, vector<1x128xf32>
    %117 = vector.broadcast %116 : vector<1x128xf32> to vector<16x128xf32>
    %118 = arith.addf %110, %117 : vector<16x128xf32>
    %cst_76 = arith.constant 0.000000e+00 : f32
    %119 = vector.broadcast %cst_76 : f32 to vector<16x128xf32>
    %120 = arith.maximumf %118, %119 : vector<16x128xf32>
    %c0_77 = arith.constant 0 : index
    %c0_78 = arith.constant 0 : index
    %121 = vector.load %arg5[%c0_77, %c0_78] : memref<1x128xf32, #tpu.memory_space<vmem>>, vector<1x128xf32>
    %122 = vector.broadcast %121 : vector<1x128xf32> to vector<16x128xf32>
    %123 = arith.addf %115, %122 : vector<16x128xf32>
    %cst_79 = arith.constant 0.000000e+00 : f32
    %124 = vector.broadcast %cst_79 : f32 to vector<16x128xf32>
    %125 = arith.maximumf %123, %124 : vector<16x128xf32>
    %126 = arith.addf %120, %125 : vector<16x128xf32>
    %c0_80 = arith.constant 0 : index
    %c0_81 = arith.constant 0 : index
    %127 = vector.load %arg6[%c0_80, %c0_81] : memref<128x256xf32, #tpu.memory_space<vmem>>, vector<128x256xf32>
    %cst_82 = arith.constant dense<0.000000e+00> : vector<16x256xf32>
    %128 = tpu.matmul %126, %127, %cst_82 {dimension_numbers = #tpu.dot_dimension_numbers<[1], [0], [0], [1], [0, 0, 1, 1], [], []>} : vector<16x128xf32>, vector<128x256xf32>, vector<16x256xf32> -> vector<16x256xf32>
    %c0_83 = arith.constant 0 : index
    %c0_84 = arith.constant 0 : index
    %129 = vector.load %arg7[%c0_83, %c0_84] : memref<1x256xf32, #tpu.memory_space<vmem>>, vector<1x256xf32>
    %130 = vector.broadcast %129 : vector<1x256xf32> to vector<16x256xf32>
    %131 = arith.addf %128, %130 : vector<16x256xf32>
    %cst_85 = arith.constant 0.000000e+00 : f32
    %132 = vector.broadcast %cst_85 : f32 to vector<16x256xf32>
    %133 = arith.maximumf %131, %132 : vector<16x256xf32>
    %c0_86 = arith.constant 0 : index
    %c0_87 = arith.constant 0 : index
    %c0_88 = arith.constant 0 : index
    %134 = vector.load %arg8[%c0_86, %c0_87, %c0_88] : memref<1x16x256xf32, #tpu.memory_space<vmem>>, vector<1x16x256xf32>
    %135 = vector.shape_cast %134 : vector<1x16x256xf32> to vector<16x256xf32>
    %136 = vector.shape_cast %133 : vector<16x256xf32> to vector<1x16x256xf32>
    tpu.vector_store %arg8[%c0_86, %c0_87, %c0_88], %136 {strides = array<i32>} : memref<1x16x256xf32, #tpu.memory_space<vmem>>, vector<1x16x256xf32>,
    return
  }
  func.func @transform_0(%arg0: i32) -> (i32, i32, i32) {
    %c0_i32 = arith.constant 0 : i32
    %c0_i32_0 = arith.constant 0 : i32
    %c0_i32_1 = arith.constant 0 : i32
    return %arg0, %c0_i32, %c0_i32_0 : i32, i32, i32
  }
  func.func @transform_1(%arg0: i32) -> (i32, i32, i32) {
    %c0_i32 = arith.constant 0 : i32
    %c0_i32_0 = arith.constant 0 : i32
    %c0_i32_1 = arith.constant 0 : i32
    %c0_i32_2 = arith.constant 0 : i32
    return %c0_i32, %c0_i32_0, %c0_i32_1 : i32, i32, i32
  }
  func.func @transform_2(%arg0: i32) -> (i32, i32) {
    %c0_i32 = arith.constant 0 : i32
    %c0_i32_0 = arith.constant 0 : i32
    %c0_i32_1 = arith.constant 0 : i32
    return %c0_i32, %c0_i32_0 : i32, i32
  }
  func.func @transform_3(%arg0: i32) -> (i32, i32, i32) {
    %c0_i32 = arith.constant 0 : i32
    %c0_i32_0 = arith.constant 0 : i32
    %c0_i32_1 = arith.constant 0 : i32
    %c0_i32_2 = arith.constant 0 : i32
    return %c0_i32, %c0_i32_0, %c0_i32_1 : i32, i32, i32
  }
  func.func @transform_4(%arg0: i32) -> (i32, i32) {
    %c0_i32 = arith.constant 0 : i32
    %c0_i32_0 = arith.constant 0 : i32
    %c0_i32_1 = arith.constant 0 : i32
    return %c0_i32, %c0_i32_0 : i32, i32
  }
  func.func @transform_5(%arg0: i32) -> (i32, i32) {
    %c0_i32 = arith.constant 0 : i32
    %c0_i32_0 = arith.constant 0 : i32
    %c0_i32_1 = arith.constant 0 : i32
    return %c0_i32, %c0_i32_0 : i32, i32
  }
  func.func @transform_6(%arg0: i32) -> (i32, i32) {
    %c0_i32 = arith.constant 0 : i32
    %c0_i32_0 = arith.constant 0 : i32
    %c0_i32_1 = arith.constant 0 : i32
    return %c0_i32, %c0_i32_0 : i32, i32
  }
  func.func @transform_7(%arg0: i32) -> (i32, i32, i32) {
    %c0_i32 = arith.constant 0 : i32
    %c0_i32_0 = arith.constant 0 : i32
    %c0_i32_1 = arith.constant 0 : i32
    return %arg0, %c0_i32, %c0_i32_0 : i32, i32, i32
  }
}

</mosaic_0001>

<llo_original>
// kernel: tpu_custom_call.1
$region0: #{tpu_custom_call.1}
  #allocation0 [shape = 'u32[]', space=smem, size = 0x4, offset = 0x4, fixed_abs, tag = 'smem constant byte address 0x4 - core index']
  #allocation1 [shape = 'u32[144,128]{1,0:T(1,128)}', space=vmem, size = 0x12000, scoped, tag = 'internal scratch']
  #allocation2 [shape = 'f32[20,128]{1,0:T(8,128)}', space=vmem, size = 0x3000, scoped, tag = 'scratch operand']
  %s0 = inlined_call_operand.hbm [shape: f32[2,16,128], index: 0, kind: input, shape index: {}]
  %s1 = inlined_call_operand.hbm [shape: f32[9,1,128], index: 1, kind: input, shape index: {}]
  %s2 = inlined_call_operand.vmem [shape: f32[1,128], index: 2, kind: input, shape index: {}]
  %s3 = inlined_call_operand.hbm [shape: f32[9,1,128], index: 3, kind: input, shape index: {}]
  %s4 = inlined_call_operand.vmem [shape: f32[1,128], index: 4, kind: input, shape index: {}]
  %s5 = inlined_call_operand.hbm [shape: f32[128,256], index: 5, kind: input, shape index: {}]
  %s6 = inlined_call_operand.vmem [shape: f32[1,256], index: 6, kind: input, shape index: {}]
  %s7 = inlined_call_operand.hbm [shape: f32[2,16,256], index: 7, kind: output, shape index: {}]
  %s8 = sld [smem:[#allocation0]]
  $region77: #{tpu_custom_call.1} parent=0
    _
  %s10 = ssub.s32 1, %s8
  %s11 = scalar_select 0, %s10, %s8
  $region1: #{tpu_custom_call.1} parent=0
    #allocation3 [shape = 'u8[16384]{0}', space=vmem, size = 0x4000, scoped, tag = 'input window, operand 0']
    #allocation4 [shape = 's32[2]{0}', space=sflag, size = 0x8, scoped, tag = 'scoped memory for tpu_custom_call.1']
    #allocation5 [shape = 's32[2]{0}', space=sflag, size = 0x8, scoped, tag = 'scoped memory for tpu_custom_call.1']
    #allocation6 [shape = 'u8[4608]{0}', space=vmem, size = 0x1400, scoped, tag = 'input window, operand 1, single buffered']
    #allocation7 [shape = 's32[1]{0}', space=sflag, size = 0x4, scoped, tag = 'scoped memory for tpu_custom_call.1']
    #allocation8 [shape = 'u8[4608]{0}', space=vmem, size = 0x1400, scoped, tag = 'input window, operand 3, single buffered']
    #allocation9 [shape = 'u8[131072]{0}', space=vmem, size = 0x20000, scoped, tag = 'input window, operand 5, single buffered']
    #allocation10 [shape = 's32[1]{0}', space=sflag, size = 0x4, scoped, tag = 'scoped memory for tpu_custom_call.1']
    #allocation11 [shape = 'u8[32768]{0}', space=vmem, size = 0x8000, scoped, tag = 'output window, operand 0']
    %12 = vsyncpa [#allocation4], 0
    %s13 = scalar_lea.sflag [#allocation4], 1
    %14 = vsyncpa %s13, 0
    %15 = vsyncpa [#allocation7], 0
    %16 = vsyncpa [#allocation10], 0
    %17 = vsyncpa [#allocation5], 0
    %s18 = scalar_lea.sflag [#allocation5], 1
    %19 = vsyncpa %s18, 0
    loop: start=0, step=1, limit=4
    $region2: #{tpu_custom_call.1} parent=1 // loop_pre_header
      _
    $region3: #{tpu_custom_call.1} parent=1 // loop_header
      %s21 = sphi 0, %s25
      %p22 = scmp.ge.s32.totalorder %s21, 4
      %s31 = sphi 0, %s33
      %s34 = sphi 0, %s31
      %s35 = sphi 0, %s34
      %s51 = sphi 0, %s35
      %s55 = sphi 0, %s55
      %s57 = sphi 0, %s55
      %s58 = sphi 0, %s57
      %s72 = sphi 0, %s58
      %s76 = sphi 0, %s76
      %s78 = sphi 0, %s76
      %s79 = sphi 0, %s78
      %s93 = sphi 0, %s79
      %s97 = sphi 0, %s97
      %s99 = sphi 0, %s97
      %s100 = sphi 0, %s99
      %s114 = sphi 0, %s100
      %s118 = sphi 0, %s118
      %s120 = sphi 0, %s118
      %s121 = sphi 0, %s120
      %s135 = sphi 0, %s121
      %s139 = sphi 0, %s139
      %s141 = sphi 0, %s139
      %s142 = sphi 0, %s141
      %s156 = sphi 0, %s142
      %s160 = sphi 0, %s160
      %s162 = sphi 0, %s160
      %s163 = sphi 0, %s162
      %s177 = sphi 0, %s163
      %s183 = sphi 0, %s185
      %s186 = sphi 0, %s183
      %s187 = sphi 0, %s186
      %s203 = sphi 0, %s187
    $region4: #{tpu_custom_call.1} parent=1 // loop_header_branch
      %24 = sbr.rel (%p22) target = $region8
    $region5: #{tpu_custom_call.1} parent=1 // loop_body
      %s26 = ssub.s32 %s21, 1
      %s27 = ssub.s32 %s21, 2
      %s28 = sadd.s32 %s21, 1
      %s29 = ssub.s32 %s21, %s28
      %p30 = scmp.eq.s32.totalorder %s29, 0
      %s32 = sadd.s32 %s31, 1
      %s33 = scalar_select %p30, %s31, %s32
      %p36 = pneg %p30
      %p37 = scmp.eq.s32.totalorder %s21, 1
      %p38 = por %p36, %p37
      %p39 = scmp.ne.s32.totalorder %s31, %s34
      %p40 = scmp.eq.s32.totalorder %s21, 0
      %p41 = por %p39, %p40
      %p42 = scmp.ne.s32.totalorder %s31, %s34
      %p43 = scmp.eq.s32.totalorder %s26, 1
      %p44 = por %p42, %p43
      %p45 = scmp.ne.s32.totalorder %s34, %s35
      %p46 = scmp.eq.s32.totalorder %s26, 0
      %p47 = por %p45, %p46
      %p48 = scmp.ne.s32.totalorder %s34, %s35
      %p49 = scmp.eq.s32.totalorder %s27, 1
      %p50 = por %p48, %p49
      %p52 = scmp.ne.s32.totalorder %s35, %s51
      %p53 = scmp.eq.s32.totalorder %s27, 0
      %p54 = por %p52, %p53
      %s56 = sadd.s32 %s55, 1
      %p59 = scmp.eq.s32.totalorder %s21, 1
      %p60 = scmp.ne.s32.totalorder %s55, %s57
      %p61 = scmp.eq.s32.totalorder %s21, 0
      %p62 = por %p60, %p61
      %p63 = scmp.ne.s32.totalorder %s55, %s57
      %p64 = scmp.eq.s32.totalorder %s26, 1
      %p65 = por %p63, %p64
      %p66 = scmp.ne.s32.totalorder %s57, %s58
      %p67 = scmp.eq.s32.totalorder %s26, 0
      %p68 = por %p66, %p67
      %p69 = scmp.ne.s32.totalorder %s57, %s58
      %p70 = scmp.eq.s32.totalorder %s27, 1
      %p71 = por %p69, %p70
      %p73 = scmp.ne.s32.totalorder %s58, %s72
      %p74 = scmp.eq.s32.totalorder %s27, 0
      %p75 = por %p73, %p74
      %s77 = sadd.s32 %s76, 1
      %p80 = scmp.eq.s32.totalorder %s21, 1
      %p81 = scmp.ne.s32.totalorder %s76, %s78
      %p82 = scmp.eq.s32.totalorder %s21, 0
      %p83 = por %p81, %p82
      %p84 = scmp.ne.s32.totalorder %s76, %s78
      %p85 = scmp.eq.s32.totalorder %s26, 1
      %p86 = por %p84, %p85
      %p87 = scmp.ne.s32.totalorder %s78, %s79
      %p88 = scmp.eq.s32.totalorder %s26, 0
      %p89 = por %p87, %p88
      %p90 = scmp.ne.s32.totalorder %s78, %s79
      %p91 = scmp.eq.s32.totalorder %s27, 1
      %p92 = por %p90, %p91
      %p94 = scmp.ne.s32.totalorder %s79, %s93
      %p95 = scmp.eq.s32.totalorder %s27, 0
      %p96 = por %p94, %p95
      %s98 = sadd.s32 %s97, 1
      %p101 = scmp.eq.s32.totalorder %s21, 1
      %p102 = scmp.ne.s32.totalorder %s97, %s99
      %p103 = scmp.eq.s32.totalorder %s21, 0
      %p104 = por %p102, %p103
      %p105 = scmp.ne.s32.totalorder %s97, %s99
      %p106 = scmp.eq.s32.totalorder %s26, 1
      %p107 = por %p105, %p106
      %p108 = scmp.ne.s32.totalorder %s99, %s100
      %p109 = scmp.eq.s32.totalorder %s26, 0
      %p110 = por %p108, %p109
      %p111 = scmp.ne.s32.totalorder %s99, %s100
      %p112 = scmp.eq.s32.totalorder %s27, 1
      %p113 = por %p111, %p112
      %p115 = scmp.ne.s32.totalorder %s100, %s114
      %p116 = scmp.eq.s32.totalorder %s27, 0
      %p117 = por %p115, %p116
      %s119 = sadd.s32 %s118, 1
      %p122 = scmp.eq.s32.totalorder %s21, 1
      %p123 = scmp.ne.s32.totalorder %s118, %s120
      %p124 = scmp.eq.s32.totalorder %s21, 0
      %p125 = por %p123, %p124
      %p126 = scmp.ne.s32.totalorder %s118, %s120
      %p127 = scmp.eq.s32.totalorder %s26, 1
      %p128 = por %p126, %p127
      %p129 = scmp.ne.s32.totalorder %s120, %s121
      %p130 = scmp.eq.s32.totalorder %s26, 0
      %p131 = por %p129, %p130
      %p132 = scmp.ne.s32.totalorder %s120, %s121
      %p133 = scmp.eq.s32.totalorder %s27, 1
      %p134 = por %p132, %p133
      %p136 = scmp.ne.s32.totalorder %s121, %s135
      %p137 = scmp.eq.s32.totalorder %s27, 0
      %p138 = por %p136, %p137
      %s140 = sadd.s32 %s139, 1
      %p143 = scmp.eq.s32.totalorder %s21, 1
      %p144 = scmp.ne.s32.totalorder %s139, %s141
      %p145 = scmp.eq.s32.totalorder %s21, 0
      %p146 = por %p144, %p145
      %p147 = scmp.ne.s32.totalorder %s139, %s141
      %p148 = scmp.eq.s32.totalorder %s26, 1
      %p149 = por %p147, %p148
      %p150 = scmp.ne.s32.totalorder %s141, %s142
      %p151 = scmp.eq.s32.totalorder %s26, 0
      %p152 = por %p150, %p151
      %p153 = scmp.ne.s32.totalorder %s141, %s142
      %p154 = scmp.eq.s32.totalorder %s27, 1
      %p155 = por %p153, %p154
      %p157 = scmp.ne.s32.totalorder %s142, %s156
      %p158 = scmp.eq.s32.totalorder %s27, 0
      %p159 = por %p157, %p158
      %s161 = sadd.s32 %s160, 1
      %p164 = scmp.eq.s32.totalorder %s21, 1
      %p165 = scmp.ne.s32.totalorder %s160, %s162
      %p166 = scmp.eq.s32.totalorder %s21, 0
      %p167 = por %p165, %p166
      %p168 = scmp.ne.s32.totalorder %s160, %s162
      %p169 = scmp.eq.s32.totalorder %s26, 1
      %p170 = por %p168, %p169
      %p171 = scmp.ne.s32.totalorder %s162, %s163
      %p172 = scmp.eq.s32.totalorder %s26, 0
      %p173 = por %p171, %p172
      %p174 = scmp.ne.s32.totalorder %s162, %s163
      %p175 = scmp.eq.s32.totalorder %s27, 1
      %p176 = por %p174, %p175
      %p178 = scmp.ne.s32.totalorder %s163, %s177
      %p179 = scmp.eq.s32.totalorder %s27, 0
      %p180 = por %p178, %p179
      %s181 = ssub.s32 %s21, %s28
      %p182 = scmp.eq.s32.totalorder %s181, 0
      %s184 = sadd.s32 %s183, 1
      %s185 = scalar_select %p182, %s183, %s184
      %p188 = pneg %p182
      %p189 = scmp.eq.s32.totalorder %s21, 1
      %p190 = por %p188, %p189
      %p191 = scmp.ne.s32.totalorder %s183, %s186
      %p192 = scmp.eq.s32.totalorder %s21, 0
      %p193 = por %p191, %p192
      %p194 = scmp.ne.s32.totalorder %s183, %s186
      %p195 = scmp.eq.s32.totalorder %s26, 1
      %p196 = por %p194, %p195
      %p197 = scmp.ne.s32.totalorder %s186, %s187
      %p198 = scmp.eq.s32.totalorder %s26, 0
      %p199 = por %p197, %p198
      %p200 = scmp.ne.s32.totalorder %s186, %s187
      %p201 = scmp.eq.s32.totalorder %s27, 1
      %p202 = por %p200, %p201
      %p204 = scmp.ne.s32.totalorder %s187, %s203
      %p205 = scmp.eq.s32.totalorder %s27, 0
      %p206 = por %p204, %p205
      %p207 = scmp.le.s32.totalorder 1, %s21
      %p208 = scmp.lt.s32.totalorder %s21, 3
      %p209 = pnand %p207, %p208
      %p210 = pneg %p209
      // Predicated region
      $region9: #{tpu_custom_call.1} parent=5 // pred_check
        _
      $region10: #{tpu_custom_call.1} parent=5 // pred_check_branch
        %212 = sbr.rel (%p209) target = $region12
      $region11: #{tpu_custom_call.1} parent=5 // pred_region
        %s213 = ssub.s32 %s21, 1
        // Predicated region
        $region13: #{tpu_custom_call.1} parent=11 // pred_check
          %p214 = pneg %p68
        $region14: #{tpu_custom_call.1} parent=11 // pred_check_branch
          %216 = sbr.rel (%p214) target = $region16
        $region15: #{tpu_custom_call.1} parent=11 // pred_region
          %s218 = ssub.s32 144, 144
          %219 = vsyncadd [#allocation7], %s218
          %s220 = sshll.u32 [#allocation6], 4
          %s221 = int_to_ptr.vmem [resolvable:$true] %s220
          %226 = dma.hbm_to_vmem [thread:$0]  %s1, 144, %s221, [#allocation7], 16, 16, 1
        $region16: #{tpu_custom_call.1} parent=11 // pred_fallthru
          _
        // Predicated region
        $region17: #{tpu_custom_call.1} parent=11 // pred_check
          %p227 = pneg %p89
        $region18: #{tpu_custom_call.1} parent=11 // pred_check_branch
          %229 = sbr.rel (%p227) target = $region20
        $region19: #{tpu_custom_call.1} parent=11 // pred_region
          _
        $region20: #{tpu_custom_call.1} parent=11 // pred_fallthru
          _
        // Predicated region
        $region21: #{tpu_custom_call.1} parent=11 // pred_check
          %p230 = pneg %p110
        $region22: #{tpu_custom_call.1} parent=11 // pred_check_branch
          %232 = sbr.rel (%p230) target = $region24
        $region23: #{tpu_custom_call.1} parent=11 // pred_region
          %s234 = ssub.s32 144, 144
          %235 = vsyncadd [#allocation7], %s234
          %s236 = sshll.u32 [#allocation8], 4
          %s237 = int_to_ptr.vmem [resolvable:$true] %s236
          %242 = dma.hbm_to_vmem [thread:$0]  %s3, 144, %s237, [#allocation7], 16, 16, 1
        $region24: #{tpu_custom_call.1} parent=11 // pred_fallthru
          _
        // Predicated region
        $region25: #{tpu_custom_call.1} parent=11 // pred_check
          %p243 = pneg %p131
        $region26: #{tpu_custom_call.1} parent=11 // pred_check_branch
          %245 = sbr.rel (%p243) target = $region28
        $region27: #{tpu_custom_call.1} parent=11 // pred_region
          _
        $region28: #{tpu_custom_call.1} parent=11 // pred_fallthru
          _
        // Predicated region
        $region29: #{tpu_custom_call.1} parent=11 // pred_check
          %p246 = pneg %p152
        $region30: #{tpu_custom_call.1} parent=11 // pred_check_branch
          %248 = sbr.rel (%p246) target = $region32
        $region31: #{tpu_custom_call.1} parent=11 // pred_region
          %s250 = ssub.s32 4096, 4096
          %251 = vsyncadd [#allocation10], %s250
          %s252 = sshll.u32 [#allocation9], 4
          %s253 = int_to_ptr.vmem [resolvable:$true] %s252
          %258 = dma.hbm_to_vmem [thread:$0]  %s5, 4096, %s253, [#allocation10], 256, 256, 16
        $region32: #{tpu_custom_call.1} parent=11 // pred_fallthru
          _
        // Predicated region
        $region33: #{tpu_custom_call.1} parent=11 // pred_check
          %p259 = pneg %p173
        $region34: #{tpu_custom_call.1} parent=11 // pred_check_branch
          %261 = sbr.rel (%p259) target = $region36
        $region35: #{tpu_custom_call.1} parent=11 // pred_region
          _
        $region36: #{tpu_custom_call.1} parent=11 // pred_fallthru
          _
      $region12: #{tpu_custom_call.1} parent=5 // pred_fallthru
        _
      %p262 = scmp.lt.s32.totalorder %s21, 2
      // Predicated region
      $region37: #{tpu_custom_call.1} parent=5 // pred_check
        %p263 = pneg %p262
      $region38: #{tpu_custom_call.1} parent=5 // pred_check_branch
        %265 = sbr.rel (%p263) target = $region40
      $region39: #{tpu_custom_call.1} parent=5 // pred_region
        // Predicated region
        $region41: #{tpu_custom_call.1} parent=39 // pred_check
          %p266 = pneg %p41
        $region42: #{tpu_custom_call.1} parent=39 // pred_check_branch
          %268 = sbr.rel (%p266) target = $region44
        $region43: #{tpu_custom_call.1} parent=39 // pred_region
          %s269 = sand.u32 %s31, 1
          %s270 = scalar_lea.sflag [#allocation4], %s269
          %s271 = sand.u32 %s31, 1
          %s272 = smul.addr %s271, 16
          %s273 = scalar_lea.vmem [#allocation3], %s272
          %s275 = ssub.s32 256, 256
          %276 = vsyncadd %s270, %s275
          %s277 = smul.addr %s21, 2
          %s278 = smul.addr %s277, 128
          %s279 = scalar_lea.hbm %s0, %s278
          %s280 = sshll.u32 %s273, 4
          %s281 = int_to_ptr.vmem [resolvable:$true] %s280
          %286 = dma.hbm_to_vmem [thread:$0]  %s279, 256, %s281, %s270, 128, 128, 8
        $region44: #{tpu_custom_call.1} parent=39 // pred_fallthru
          _
      $region40: #{tpu_custom_call.1} parent=5 // pred_fallthru
        _
      %p287 = scmp.le.s32.totalorder 1, %s21
      %p288 = scmp.lt.s32.totalorder %s21, 3
      %p289 = pnand %p287, %p288
      %p290 = pneg %p289
      // Predicated region
      $region45: #{tpu_custom_call.1} parent=5 // pred_check
        _
      $region46: #{tpu_custom_call.1} parent=5 // pred_check_branch
        %292 = sbr.rel (%p289) target = $region48
      $region47: #{tpu_custom_call.1} parent=5 // pred_region
        %s293 = ssub.s32 %s21, 1
        %s294 = sand.u32 %s34, 1
        %s295 = scalar_lea.sflag [#allocation4], %s294
        %s296 = sand.u32 %s34, 1
        %s297 = smul.addr %s296, 16
        %s298 = scalar_lea.vmem [#allocation3], %s297
        // Predicated region
        $region49: #{tpu_custom_call.1} parent=47 // pred_check
          %p299 = pneg %p47
        $region50: #{tpu_custom_call.1} parent=47 // pred_check_branch
          %301 = sbr.rel (%p299) target = $region52
        $region51: #{tpu_custom_call.1} parent=47 // pred_region
          %302 = dma.done %s295, 256
        $region52: #{tpu_custom_call.1} parent=47 // pred_fallthru
          _
        // Predicated region
        $region53: #{tpu_custom_call.1} parent=47 // pred_check
          %p303 = pneg %p68
        $region54: #{tpu_custom_call.1} parent=47 // pred_check_branch
          %305 = sbr.rel (%p303) target = $region56
        $region55: #{tpu_custom_call.1} parent=47 // pred_region
          %306 = dma.done [#allocation7], 144
        $region56: #{tpu_custom_call.1} parent=47 // pred_fallthru
          _
        // Predicated region
        $region57: #{tpu_custom_call.1} parent=47 // pred_check
          %p307 = pneg %p110
        $region58: #{tpu_custom_call.1} parent=47 // pred_check_branch
          %309 = sbr.rel (%p307) target = $region60
        $region59: #{tpu_custom_call.1} parent=47 // pred_region
          %310 = dma.done [#allocation7], 144
        $region60: #{tpu_custom_call.1} parent=47 // pred_fallthru
          _
        // Predicated region
        $region61: #{tpu_custom_call.1} parent=47 // pred_check
          %p311 = pneg %p152
        $region62: #{tpu_custom_call.1} parent=47 // pred_check_branch
          %313 = sbr.rel (%p311) target = $region64
        $region63: #{tpu_custom_call.1} parent=47 // pred_region
          %314 = dma.done [#allocation10], 4096
        $region64: #{tpu_custom_call.1} parent=47 // pred_fallthru
          _
        %s315 = sand.u32 %s34, 1
        %s316 = scalar_lea.sflag [#allocation4], %s315
        %s317 = sand.u32 %s34, 1
        %s318 = smul.addr %s317, 16
        %s319 = scalar_lea.vmem [#allocation3], %s318
        %p320 = pneg %p47
        %p321 = pneg %p44
        %p322 = pneg %p68
        %p323 = pneg %p65
        %p324 = pneg %p89
        %p325 = pneg %p86
        %p326 = pneg %p110
        %p327 = pneg %p107
        %p328 = pneg %p131
        %p329 = pneg %p128
        %p330 = pneg %p152
        %p331 = pneg %p149
        %p332 = pneg %p173
        %p333 = pneg %p170
        %p334 = pneg %p199
        %p335 = pneg %p196
        %s336 = sand.u32 %s186, 1
        %s337 = scalar_lea.sflag [#allocation5], %s336
        %s338 = sand.u32 %s186, 1
        %s339 = smul.addr %s338, 32
        %s340 = scalar_lea.vmem [#allocation11], %s339
        %341 = vst [vmem:[#allocation2] sm:$0x3] 0.0
        %342 = vst [vmem:[#allocation2 + $0x12] sm:$0x3] 0.0
        %v343 = vld [vmem:[%s298] sm:$0xff]
        %v344 = vld [vmem:[%s298 + $0x8] sm:$0xff]
        %345 = vst [vmem:[#allocation2 + $0x2] sm:$0xff] %v343
        %346 = vst [vmem:[#allocation2 + $0xa] sm:$0xff] %v344
        %v347 = vld [vmem:[#allocation2 + $0x1] sm:$0xff]
        %v348 = vld [vmem:[#allocation2 + $0x9] sm:$0xff]
        %v349 = vld [vmem:[#allocation2] sm:$0xff]
        %v350 = vld [vmem:[#allocation2 + $0x8] sm:$0xff]
        %351 = vrot.lane.b32.xlu0 %v347, 8
        %v352 = vpop.permute.xlu0 %351
        %353 = vrot.lane.b32.xlu0 %v348, 8
        %v354 = vpop.permute.xlu0 %353
        %355 = vrot.lane.b32.xlu0 %v349, 16
        %v356 = vpop.permute.xlu0 %355
        %357 = vrot.lane.b32.xlu0 %v350, 16
        %v358 = vpop.permute.xlu0 %357
        %v359 = vld [vmem:[#allocation6] sm:$0x1]
        %v361 = vlaneseq
        %v362 = vshrl.u32 %v361, 7
        %v363 = vsub.s32 0, %v362
        %v364 = vrot.slane %v359, %v363
        %v366 = vmul.f32 %v352, %v364
        %v367 = vmul.f32 %v354, %v364
        %v368 = vadd.f32 %v366, 0.0
        %v369 = vadd.f32 %v367, 0.0
        %v370 = vld [vmem:[#allocation8] sm:$0x1]
        %v372 = vlaneseq
        %v373 = vshrl.u32 %v372, 7
        %v374 = vsub.s32 0, %v373
        %v375 = vrot.slane %v370, %v374
        %v377 = vmul.f32 %v356, %v375
        %v378 = vmul.f32 %v358, %v375
        %v379 = vadd.f32 %v377, 0.0
        %v380 = vadd.f32 %v378, 0.0
        %s381 = scalar_lea.vmem [#allocation6], 1
        %v382 = vld [vmem:[%s381] sm:$0x1]
        %v384 = vlaneseq
        %v385 = vshrl.u32 %v384, 7
        %v386 = vsub.s32 0, %v385
        %v387 = vrot.slane %v382, %v386
        %v389 = vmul.f32 %v347, %v387
        %v390 = vmul.f32 %v348, %v387
        %v391 = vadd.f32 %v368, %v389
        %v392 = vadd.f32 %v369, %v390
        %s393 = scalar_lea.vmem [#allocation8], 1
        %v394 = vld [vmem:[%s393] sm:$0x1]
        %v396 = vlaneseq
        %v397 = vshrl.u32 %v396, 7
        %v398 = vsub.s32 0, %v397
        %v399 = vrot.slane %v394, %v398
        %v401 = vmul.f32 %v349, %v399
        %v402 = vmul.f32 %v350, %v399
        %v403 = vadd.f32 %v379, %v401
        %v404 = vadd.f32 %v380, %v402
        %405 = vrot.lane.b32.xlu0 %v347, 120
        %v406 = vpop.permute.xlu0 %405
        %407 = vrot.lane.b32.xlu0 %v348, 120
        %v408 = vpop.permute.xlu0 %407
        %409 = vrot.lane.b32.xlu0 %v349, 112
        %v410 = vpop.permute.xlu0 %409
        %411 = vrot.lane.b32.xlu0 %v350, 112
        %v412 = vpop.permute.xlu0 %411
        %s413 = scalar_lea.vmem [#allocation6], 2
        %v414 = vld [vmem:[%s413] sm:$0x1]
        %v416 = vlaneseq
        %v417 = vshrl.u32 %v416, 7
        %v418 = vsub.s32 0, %v417
        %v419 = vrot.slane %v414, %v418
        %v421 = vmul.f32 %v406, %v419
        %v422 = vmul.f32 %v408, %v419
        %v423 = vadd.f32 %v391, %v421
        %v424 = vadd.f32 %v392, %v422
        %s425 = scalar_lea.vmem [#allocation8], 2
        %v426 = vld [vmem:[%s425] sm:$0x1]
        %v428 = vlaneseq
        %v429 = vshrl.u32 %v428, 7
        %v430 = vsub.s32 0, %v429
        %v431 = vrot.slane %v426, %v430
        %v433 = vmul.f32 %v410, %v431
        %v434 = vmul.f32 %v412, %v431
        %v435 = vadd.f32 %v403, %v433
        %v436 = vadd.f32 %v404, %v434
        %v437 = vld [vmem:[#allocation2 + $0x2] sm:$0xff]
        %v438 = vld [vmem:[#allocation2 + $0xa] sm:$0xff]
        %439 = vrot.lane.b32.xlu0 %v437, 8
        %v440 = vpop.permute.xlu0 %439
        %441 = vrot.lane.b32.xlu0 %v438, 8
        %v442 = vpop.permute.xlu0 %441
        %443 = vrot.lane.b32.xlu0 %v437, 16
        %v444 = vpop.permute.xlu0 %443
        %445 = vrot.lane.b32.xlu0 %v438, 16
        %v446 = vpop.permute.xlu0 %445
        %s447 = scalar_lea.vmem [#allocation6], 3
        %v448 = vld [vmem:[%s447] sm:$0x1]
        %v450 = vlaneseq
        %v451 = vshrl.u32 %v450, 7
        %v452 = vsub.s32 0, %v451
        %v453 = vrot.slane %v448, %v452
        %v455 = vmul.f32 %v440, %v453
        %v456 = vmul.f32 %v442, %v453
        %v457 = vadd.f32 %v423, %v455
        %v458 = vadd.f32 %v424, %v456
        %s459 = scalar_lea.vmem [#allocation8], 3
        %v460 = vld [vmem:[%s459] sm:$0x1]
        %v462 = vlaneseq
        %v463 = vshrl.u32 %v462, 7
        %v464 = vsub.s32 0, %v463
        %v465 = vrot.slane %v460, %v464
        %v467 = vmul.f32 %v444, %v465
        %v468 = vmul.f32 %v446, %v465
        %v469 = vadd.f32 %v435, %v467
        %v470 = vadd.f32 %v436, %v468
        %s471 = scalar_lea.vmem [#allocation6], 4
        %v472 = vld [vmem:[%s471] sm:$0x1]
        %v474 = vlaneseq
        %v475 = vshrl.u32 %v474, 7
        %v476 = vsub.s32 0, %v475
        %v477 = vrot.slane %v472, %v476
        %v479 = vmul.f32 %v437, %v477
        %v480 = vmul.f32 %v438, %v477
        %v481 = vadd.f32 %v457, %v479
        %v482 = vadd.f32 %v458, %v480
        %s483 = scalar_lea.vmem [#allocation8], 4
        %v484 = vld [vmem:[%s483] sm:$0x1]
        %v486 = vlaneseq
        %v487 = vshrl.u32 %v486, 7
        %v488 = vsub.s32 0, %v487
        %v489 = vrot.slane %v484, %v488
        %v491 = vmul.f32 %v437, %v489
        %v492 = vmul.f32 %v438, %v489
        %v493 = vadd.f32 %v469, %v491
        %v494 = vadd.f32 %v470, %v492
        %495 = vrot.lane.b32.xlu0 %v437, 120
        %v496 = vpop.permute.xlu0 %495
        %497 = vrot.lane.b32.xlu0 %v438, 120
        %v498 = vpop.permute.xlu0 %497
        %499 = vrot.lane.b32.xlu0 %v437, 112
        %v500 = vpop.permute.xlu0 %499
        %501 = vrot.lane.b32.xlu0 %v438, 112
        %v502 = vpop.permute.xlu0 %501
        %s503 = scalar_lea.vmem [#allocation6], 5
        %v504 = vld [vmem:[%s503] sm:$0x1]
        %v506 = vlaneseq
        %v507 = vshrl.u32 %v506, 7
        %v508 = vsub.s32 0, %v507
        %v509 = vrot.slane %v504, %v508
        %v511 = vmul.f32 %v496, %v509
        %v512 = vmul.f32 %v498, %v509
        %v513 = vadd.f32 %v481, %v511
        %v514 = vadd.f32 %v482, %v512
        %s515 = scalar_lea.vmem [#allocation8], 5
        %v516 = vld [vmem:[%s515] sm:$0x1]
        %v518 = vlaneseq
        %v519 = vshrl.u32 %v518, 7
        %v520 = vsub.s32 0, %v519
        %v521 = vrot.slane %v516, %v520
        %v523 = vmul.f32 %v500, %v521
        %v524 = vmul.f32 %v502, %v521
        %v525 = vadd.f32 %v493, %v523
        %v526 = vadd.f32 %v494, %v524
        %v527 = vld [vmem:[#allocation2 + $0x3] sm:$0xff]
        %v528 = vld [vmem:[#allocation2 + $0xb] sm:$0xff]
        %v529 = vld [vmem:[#allocation2 + $0x4] sm:$0xff]
        %v530 = vld [vmem:[#allocation2 + $0xc] sm:$0xff]
        %531 = vrot.lane.b32.xlu0 %v527, 8
        %v532 = vpop.permute.xlu0 %531
        %533 = vrot.lane.b32.xlu0 %v528, 8
        %v534 = vpop.permute.xlu0 %533
        %535 = vrot.lane.b32.xlu0 %v529, 16
        %v536 = vpop.permute.xlu0 %535
        %537 = vrot.lane.b32.xlu0 %v530, 16
        %v538 = vpop.permute.xlu0 %537
        %s539 = scalar_lea.vmem [#allocation6], 6
        %v540 = vld [vmem:[%s539] sm:$0x1]
        %v542 = vlaneseq
        %v543 = vshrl.u32 %v542, 7
        %v544 = vsub.s32 0, %v543
        %v545 = vrot.slane %v540, %v544
        %v547 = vmul.f32 %v532, %v545
        %v548 = vmul.f32 %v534, %v545
        %v549 = vadd.f32 %v513, %v547
        %v550 = vadd.f32 %v514, %v548
        %s551 = scalar_lea.vmem [#allocation8], 6
        %v552 = vld [vmem:[%s551] sm:$0x1]
        %v554 = vlaneseq
        %v555 = vshrl.u32 %v554, 7
        %v556 = vsub.s32 0, %v555
        %v557 = vrot.slane %v552, %v556
        %v559 = vmul.f32 %v536, %v557
        %v560 = vmul.f32 %v538, %v557
        %v561 = vadd.f32 %v525, %v559
        %v562 = vadd.f32 %v526, %v560
        %s563 = scalar_lea.vmem [#allocation6], 7
        %v564 = vld [vmem:[%s563] sm:$0x1]
        %v566 = vlaneseq
        %v567 = vshrl.u32 %v566, 7
        %v568 = vsub.s32 0, %v567
        %v569 = vrot.slane %v564, %v568
        %v571 = vmul.f32 %v527, %v569
        %v572 = vmul.f32 %v528, %v569
        %v573 = vadd.f32 %v549, %v571
        %v574 = vadd.f32 %v550, %v572
        %s575 = scalar_lea.vmem [#allocation8], 7
        %v576 = vld [vmem:[%s575] sm:$0x1]
        %v578 = vlaneseq
        %v579 = vshrl.u32 %v578, 7
        %v580 = vsub.s32 0, %v579
        %v581 = vrot.slane %v576, %v580
        %v583 = vmul.f32 %v529, %v581
        %v584 = vmul.f32 %v530, %v581
        %v585 = vadd.f32 %v561, %v583
        %v586 = vadd.f32 %v562, %v584
        %587 = vrot.lane.b32.xlu0 %v527, 120
        %v588 = vpop.permute.xlu0 %587
        %589 = vrot.lane.b32.xlu0 %v528, 120
        %v590 = vpop.permute.xlu0 %589
        %591 = vrot.lane.b32.xlu0 %v529, 112
        %v592 = vpop.permute.xlu0 %591
        %593 = vrot.lane.b32.xlu0 %v530, 112
        %v594 = vpop.permute.xlu0 %593
        %s595 = scalar_lea.vmem [#allocation6], 8
        %v596 = vld [vmem:[%s595] sm:$0x1]
        %v598 = vlaneseq
        %v599 = vshrl.u32 %v598, 7
        %v600 = vsub.s32 0, %v599
        %v601 = vrot.slane %v596, %v600
        %v603 = vmul.f32 %v588, %v601
        %v604 = vmul.f32 %v590, %v601
        %v605 = vadd.f32 %v573, %v603
        %v606 = vadd.f32 %v574, %v604
        %s607 = scalar_lea.vmem [#allocation8], 8
        %v608 = vld [vmem:[%s607] sm:$0x1]
        %v610 = vlaneseq
        %v611 = vshrl.u32 %v610, 7
        %v612 = vsub.s32 0, %v611
        %v613 = vrot.slane %v608, %v612
        %v615 = vmul.f32 %v592, %v613
        %v616 = vmul.f32 %v594, %v613
        %v617 = vadd.f32 %v585, %v615
        %v618 = vadd.f32 %v586, %v616
        %v619 = vld [vmem:[%s2] sm:$0x1]
        %v621 = vlaneseq
        %v622 = vshrl.u32 %v621, 7
        %v623 = vsub.s32 0, %v622
        %v624 = vrot.slane %v619, %v623
        %v626 = vadd.f32 %v605, %v624
        %v627 = vadd.f32 %v606, %v624
        %v628 = vmax.f32 %v626, 0.0
        %v629 = vmax.f32 %v627, 0.0
        %v630 = vld [vmem:[%s4] sm:$0x1]
        %v632 = vlaneseq
        %v633 = vshrl.u32 %v632, 7
        %v634 = vsub.s32 0, %v633
        %v635 = vrot.slane %v630, %v634
        %v637 = vadd.f32 %v617, %v635
        %v638 = vadd.f32 %v618, %v635
        %v639 = vmax.f32 %v637, 0.0
        %v640 = vmax.f32 %v638, 0.0
        %v641 = vadd.f32 %v628, %v639
        %v642 = vadd.f32 %v629, %v640
        %v643 = vld [vmem:[#allocation9] sm:$0xff]
        %v644 = vld [vmem:[#allocation9 + $0x8] sm:$0xff]
        %v645 = vld [vmem:[#allocation9 + $0x10] sm:$0xff]
        %v646 = vld [vmem:[#allocation9 + $0x18] sm:$0xff]
        %v647 = vld [vmem:[#allocation9 + $0x20] sm:$0xff]
        %v648 = vld [vmem:[#allocation9 + $0x28] sm:$0xff]
        %v649 = vld [vmem:[#allocation9 + $0x30] sm:$0xff]
        %v650 = vld [vmem:[#allocation9 + $0x38] sm:$0xff]
        %v651 = vld [vmem:[#allocation9 + $0x40] sm:$0xff]
        %v652 = vld [vmem:[#allocation9 + $0x48] sm:$0xff]
        %v653 = vld [vmem:[#allocation9 + $0x50] sm:$0xff]
        %v654 = vld [vmem:[#allocation9 + $0x58] sm:$0xff]
        %v655 = vld [vmem:[#allocation9 + $0x60] sm:$0xff]
        %v656 = vld [vmem:[#allocation9 + $0x68] sm:$0xff]
        %v657 = vld [vmem:[#allocation9 + $0x70] sm:$0xff]
        %v658 = vld [vmem:[#allocation9 + $0x78] sm:$0xff]
        %v659 = vld [vmem:[#allocation9 + $0x80] sm:$0xff]
        %v660 = vld [vmem:[#allocation9 + $0x88] sm:$0xff]
        %v661 = vld [vmem:[#allocation9 + $0x90] sm:$0xff]
        %v662 = vld [vmem:[#allocation9 + $0x98] sm:$0xff]
        %v663 = vld [vmem:[#allocation9 + $0xa0] sm:$0xff]
        %v664 = vld [vmem:[#allocation9 + $0xa8] sm:$0xff]
        %v665 = vld [vmem:[#allocation9 + $0xb0] sm:$0xff]
        %v666 = vld [vmem:[#allocation9 + $0xb8] sm:$0xff]
        %v667 = vld [vmem:[#allocation9 + $0xc0] sm:$0xff]
        %v668 = vld [vmem:[#allocation9 + $0xc8] sm:$0xff]
        %v669 = vld [vmem:[#allocation9 + $0xd0] sm:$0xff]
        %v670 = vld [vmem:[#allocation9 + $0xd8] sm:$0xff]
        %v671 = vld [vmem:[#allocation9 + $0xe0] sm:$0xff]
        %v672 = vld [vmem:[#allocation9 + $0xe8] sm:$0xff]
        %v673 = vld [vmem:[#allocation9 + $0xf0] sm:$0xff]
        %v674 = vld [vmem:[#allocation9 + $0xf8] sm:$0xff]
        %v675 = vld [vmem:[%s6] sm:$0x3]
        %v677 = vlaneseq
        %v678 = vshrl.u32 %v677, 7
        %v679 = vsub.s32 0, %v678
        %v680 = vrot.slane %v675, %v679
        %v681 = vlaneseq
        %v682 = vshrl.u32 %v681, 7
        %v683 = vsub.s32 1, %v682
        %v684 = vrot.slane %v675, %v683
        %687 = vmatprep.subr.mxu0 %v674
        %688 = vmatpush1.msra.mxu0 %v673
        %689 = vmatprep.subr.mxu0 %v672
        %690 = vmatpush1.msra.mxu0 %v671
        %691 = vmatprep.subr.mxu0 %v670
        %692 = vmatpush1.msra.mxu0 %v669
        %693 = vmatprep.subr.mxu0 %v668
        %694 = vmatpush1.msra.mxu0 %v667
        %695 = vmatprep.subr.mxu0 %v666
        %696 = vmatpush1.msra.mxu0 %v665
        %697 = vmatprep.subr.mxu0 %v664
        %698 = vmatpush1.msra.mxu0 %v663
        %699 = vmatprep.subr.mxu0 %v662
        %700 = vmatpush1.msra.mxu0 %v661
        %701 = vmatprep.subr.mxu0 %v660
        %702 = vmatpush1.msra.mxu0 %v659
        %703 = vmatprep.subr.mxu0 %v658
        %704 = vmatpush1.msra.mxu0 %v657
        %705 = vmatprep.subr.mxu0 %v656
        %706 = vmatpush1.msra.mxu0 %v655
        %707 = vmatprep.subr.mxu0 %v654
        %708 = vmatpush1.msra.mxu0 %v653
        %709 = vmatprep.subr.mxu0 %v652
        %710 = vmatpush1.msra.mxu0 %v651
        %711 = vmatprep.subr.mxu0 %v650
        %712 = vmatpush1.msra.mxu0 %v649
        %713 = vmatprep.subr.mxu0 %v648
        %714 = vmatpush1.msra.mxu0 %v647
        %715 = vmatprep.subr.mxu0 %v646
        %716 = vmatpush1.msra.mxu0 %v645
        %717 = vmatprep.subr.mxu0 %v644
        %718 = vmatpush1.msra.mxu0 %v643
        %719 = vmatprep.subr.mxu0 0.0
        %720 = vmatpush2.msra.mxu0 0.0
        %721 = vmatprep.subr.mxu0 0.0
        %722 = vmatpush2.msra.mxu0 0.0
        %723 = vmatprep.subr.mxu0 0.0
        %724 = vmatpush2.msra.mxu0 0.0
        %725 = vmatprep.subr.mxu0 0.0
        %726 = vmatpush2.msra.mxu0 0.0
        %727 = vmatprep.subr.mxu0 0.0
        %728 = vmatpush2.msra.mxu0 0.0
        %729 = vmatprep.subr.mxu0 0.0
        %730 = vmatpush2.msra.mxu0 0.0
        %731 = vmatprep.subr.mxu0 0.0
        %732 = vmatpush2.msra.mxu0 0.0
        %733 = vmatprep.subr.mxu0 0.0
        %734 = vmatpush2.msra.mxu0 0.0
        %735 = vmatprep.subr.mxu0 0.0
        %736 = vmatpush2.msra.mxu0 0.0
        %737 = vmatprep.subr.mxu0 0.0
        %738 = vmatpush2.msra.mxu0 0.0
        %739 = vmatprep.subr.mxu0 0.0
        %740 = vmatpush2.msra.mxu0 0.0
        %741 = vmatprep.subr.mxu0 0.0
        %742 = vmatpush2.msra.mxu0 0.0
        %743 = vmatprep.subr.mxu0 0.0
        %744 = vmatpush2.msra.mxu0 0.0
        %745 = vmatprep.subr.mxu0 0.0
        %746 = vmatpush2.msra.mxu0 0.0
        %747 = vmatprep.subr.mxu0 0.0
        %748 = vmatpush2.msra.mxu0 0.0
        %749 = vmatprep.subr.mxu0 0.0
        %750 = vmatpush2.msra.mxu0 0.0
        %751 = vmatprep.mubr.f32.mxu0 0.0
        %752 = vmatmul.mubr.f32.gmra.mxu0 %v641
        %v753 = vpop.f32.mrf.mxu0
        %v754 = vadd.f32 %v680, %v753
        %v755 = vpop.f32.mrf.mxu0
        %v756 = vadd.f32 %v684, %v755
        %757 = vmatprep.mubr.f32.mxu0 0.0
        %758 = vmatmul.mubr.f32.gmra.mxu0 %v642
        %v759 = vpop.f32.mrf.mxu0
        %v760 = vadd.f32 %v680, %v759
        %v761 = vpop.f32.mrf.mxu0
        %v762 = vadd.f32 %v684, %v761
        %763 = vdwg.mxu0
        %v764 = vmax.f32 %v754, 0.0
        %v765 = vmax.f32 %v756, 0.0
        %v766 = vmax.f32 %v760, 0.0
        %v767 = vmax.f32 %v762, 0.0
        %768 = vst [vmem:[%s340] sm:$0xff] %v764
        %769 = vst [vmem:[%s340 + $0x8] sm:$0xff] %v765
        %770 = vst [vmem:[%s340 + $0x10] sm:$0xff] %v766
        %771 = vst [vmem:[%s340 + $0x18] sm:$0xff] %v767
        %s772 = sand.u32 %s186, 1
        %s773 = scalar_lea.sflag [#allocation5], %s772
        %s774 = sand.u32 %s186, 1
        %s775 = smul.addr %s774, 32
        %s776 = scalar_lea.vmem [#allocation11], %s775
        // Predicated region
        $region65: #{tpu_custom_call.1} parent=47 // pred_check
          %p777 = pneg %p196
        $region66: #{tpu_custom_call.1} parent=47 // pred_check_branch
          %779 = sbr.rel (%p777) target = $region68
        $region67: #{tpu_custom_call.1} parent=47 // pred_region
          %s781 = ssub.s32 512, 512
          %782 = vsyncadd %s773, %s781
          %s783 = smul.addr %s26, 4
          %s784 = smul.addr %s783, 128
          %s785 = scalar_lea.hbm %s7, %s784
          %s786 = sshll.u32 %s776, 4
          %s787 = int_to_ptr.vmem [resolvable:$true] %s786
          %792 = dma.vmem_to_hbm [thread:$0]  %s787, 512, %s785, %s773, 256, 256, 16
        $region68: #{tpu_custom_call.1} parent=47 // pred_fallthru
          _
      $region48: #{tpu_custom_call.1} parent=5 // pred_fallthru
        _
      %p793 = scmp.le.s32.totalorder 2, %s21
      // Predicated region
      $region69: #{tpu_custom_call.1} parent=5 // pred_check
        %p794 = pneg %p793
      $region70: #{tpu_custom_call.1} parent=5 // pred_check_branch
        %796 = sbr.rel (%p794) target = $region72
      $region71: #{tpu_custom_call.1} parent=5 // pred_region
        %s797 = ssub.s32 %s21, 2
        // Predicated region
        $region73: #{tpu_custom_call.1} parent=71 // pred_check
          %p798 = pneg %p202
        $region74: #{tpu_custom_call.1} parent=71 // pred_check_branch
          %800 = sbr.rel (%p798) target = $region76
        $region75: #{tpu_custom_call.1} parent=71 // pred_region
          %s801 = sand.u32 %s187, 1
          %s802 = scalar_lea.sflag [#allocation5], %s801
          %s803 = sand.u32 %s187, 1
          %s804 = smul.addr %s803, 32
          %s805 = scalar_lea.vmem [#allocation11], %s804
          %806 = dma.done %s802, 512
        $region76: #{tpu_custom_call.1} parent=71 // pred_fallthru
          _
      $region72: #{tpu_custom_call.1} parent=5 // pred_fallthru
        _
    $region6: #{tpu_custom_call.1} parent=1 // loop_footer
      %s25 = sadd.s32 1, %s21
    $region7: #{tpu_custom_call.1} parent=1 // loop_footer_branch
      %20 = sbr.rel target = $region3
    $region8: #{tpu_custom_call.1} parent=1 // loop_exit
      _
    %807 = vsyncpa [#allocation4], 1
    %s808 = scalar_lea.sflag [#allocation4], 1
    %809 = vsyncpa %s808, 1
    %810 = vsyncpa [#allocation7], 1
    %811 = vsyncpa [#allocation10], 1
    %812 = vsyncpa [#allocation5], 1
    %s813 = scalar_lea.sflag [#allocation5], 1
    %814 = vsyncpa %s813, 1

</llo_original>
